<compile_context>
chip_gen: v7x
topology: tpu7x:2x2x1
jax: 0.10.0
libtpu: 0.0.40
codegen_flags: <defaults>
</compile_context>

<pallas_src>
import jax
import jax.numpy as jnp
from jax.experimental import pallas as pl
from jax.experimental.pallas import tpu as pltpu


def _concnnam_kernel(x_ref, wmax_ref, wavg_ref, bias_ref, o_ref):
    # x_ref / o_ref: (D, T)  channels on sublanes, lane-dense slab of columns
    # wmax_ref / wavg_ref: (D, D)  halves of the 1x1-conv weight, [max] / [avg]
    # bias_ref: (D, 1)
    x = x_ref[...]
    D = x.shape[0]
    row = jax.lax.broadcasted_iota(jnp.int32, x.shape, 0)

    # Edge-replicated neighbours along the channel (sublane) axis:
    #   x_prev[d] = x[max(d-1, 0)],  x_next[d] = x[min(d+1, D-1)]
    # pltpu.roll keeps the shuffle on the XLU; the iota fix-up clamps the edges.
    x_prev = jnp.where(row == 0, x, pltpu.roll(x, shift=1, axis=0))
    x_next = jnp.where(row == D - 1, x, pltpu.roll(x, shift=D - 1, axis=0))

    maxp = jnp.maximum(jnp.maximum(x_prev, x), x_next)   # MaxPool1d(k=3, s=1)
    avgp = (x_prev + x + x_next) * (1.0 / 3.0)            # AvgPool1d(k=3, s=1)

    # Fused 1x1 conv as two accumulated MXU matmuls (no (2D, T) concat temp).
    # Input-channel order [max ; avg] matches PyTorch's `avg, max = self.avg(x)`
    # name swap.
    out = jnp.dot(wmax_ref[...], maxp, preferred_element_type=jnp.float32)
    out = out + jnp.dot(wavg_ref[...], avgp, preferred_element_type=jnp.float32)
    o_ref[...] = (out + bias_ref[...]).astype(o_ref.dtype)


def _pick_lane_tile(n, d, budget_bytes=16 << 20, elt_bytes=4):
    """Largest multiple-of-128 divisor of n whose (d, t) working set fits budget.

    Working set per grid step is budgeted as ~10 block-equivalents of (d, t):
      2x double-buffered input + 2x double-buffered output + ~4 pooling
      temporaries (x_prev/x_next/maxp/avgp) + ~2 for the constant-index
      weight/bias blocks at large d.  A 16 MiB budget fits v5e's default scoped
      VMEM; v6e/v7x (32 MiB scoped) have extra headroom, so no
      vmem_limit_bytes override is required.
    """
    t_max = max(128, budget_bytes // (10 * d * elt_bytes))
    best = 0
    t = 128
    limit = min(n, t_max)
    while t <= limit:
        if n % t == 0:
            best = t
        t += 128
    if best:
        return best
    # No multiple-of-128 divisor fits (n < 128 or awkward n): a full-extent
    # block is always a legal last block dim.
    return n


def concnnam_forward(x, W, b):
    """conCNNAM forward.

    x: (B, D, L); W: (D, 2*D) 1x1-conv weight (kernel dim squeezed) whose
    input-channel halves are ordered [max-pool ; avg-pool] (matching PyTorch's
    `avg, max = self.avg(x); cat([avg, max])` name swap); b: (D,).
    """
    B, D, L = x.shape
    assert W.shape == (D, 2 * D) and b.shape == (D,), "weight must be [max ; avg] ordered (D, 2D)"
    out_dtype = x.dtype

    # Split the weight into its [max] / [avg] halves outside the kernel so each
    # block is full-extent (no in-kernel lane slicing / masking).
    w_max, w_avg = W[:, :D], W[:, D:]

    # Sublane alignment: pad channels to a multiple of 8 (f32 sublane height).
    # The activation pad REPLICATES the last channel so the in-kernel edge
    # fix-up at the true top row still sees a replicated neighbour; padded
    # weight rows/cols and bias entries are zero, so padded channels contribute
    # nothing and padded output rows are dropped at the end.
    D_p = ((D + 7) // 8) * 8
    if D_p != D:
        pad = D_p - D
        x = jnp.concatenate([x, jnp.repeat(x[:, -1:, :], pad, axis=1)], axis=1)
        w_max = jnp.pad(w_max, ((0, pad), (0, pad)))
        w_avg = jnp.pad(w_avg, ((0, pad), (0, pad)))
        b = jnp.pad(b, (0, pad))
    bias_col = b.reshape(D_p, 1)

    if L >= 128:
        # Main path: native (B, D, L) layout, no HBM relayout. Batch is a
        # squeezed grid axis; L is tiled lane-dense. Both grid axes are
        # "parallel" so v7x can shard them across its two TensorCores (B >= 2
        # already guarantees >= 2 parallel steps).
        tl = _pick_lane_tile(L, D_p)
        grid = (B, L // tl)
        out = pl.pallas_call(
            _concnnam_kernel,
            out_shape=jax.ShapeDtypeStruct((B, D_p, L), out_dtype),
            grid_spec=pltpu.PrefetchScalarGridSpec(
                num_scalar_prefetch=0,
                grid=grid,
                in_specs=[
                    pl.BlockSpec((None, D_p, tl), lambda bi, li: (bi, 0, li)),  # activations
                    pl.BlockSpec((D_p, D_p), lambda bi, li: (0, 0)),            # W_max (constant)
                    pl.BlockSpec((D_p, D_p), lambda bi, li: (0, 0)),            # W_avg (constant)
                    pl.BlockSpec((D_p, 1), lambda bi, li: (0, 0)),               # bias column
                ],
                out_specs=pl.BlockSpec((None, D_p, tl), lambda bi, li: (bi, 0, li)),
            ),
            compiler_params=pltpu.CompilerParams(
                dimension_semantics=("parallel", "parallel"),
            ),
        )(x, w_max, w_avg, bias_col)
    else:
        # Fallback for L < 128 only: fold batch into the lane axis so stores
        # stay lane-dense (sub-128 output widths force masked vst.msk stores).
        # Pooling is along D, so every lane column is an independent (b, l)
        # pair and the fold is exact.
        N = B * L
        x2d = jnp.transpose(x, (1, 0, 2)).reshape(D_p, N)
        tn = _pick_lane_tile(N, D_p)
        grid = (N // tn,)
        out2d = pl.pallas_call(
            _concnnam_kernel,
            out_shape=jax.ShapeDtypeStruct((D_p, N), out_dtype),
            grid_spec=pltpu.PrefetchScalarGridSpec(
                num_scalar_prefetch=0,
                grid=grid,
                in_specs=[
                    pl.BlockSpec((D_p, tn), lambda i: (0, i)),
                    pl.BlockSpec((D_p, D_p), lambda i: (0, 0)),
                    pl.BlockSpec((D_p, D_p), lambda i: (0, 0)),
                    pl.BlockSpec((D_p, 1), lambda i: (0, 0)),
                ],
                out_specs=pl.BlockSpec((D_p, tn), lambda i: (0, i)),
            ),
            compiler_params=pltpu.CompilerParams(
                dimension_semantics=("parallel",),
            ),
        )(x2d, w_max, w_avg, bias_col)
        out = jnp.transpose(out2d.reshape(D_p, B, L), (1, 0, 2))

    return out[:, :D, :] if D_p != D else out


def concnnam_reference(x, W, b):
    """Pure-JAX reference matching the PyTorch forward exactly."""
    xp = jnp.concatenate([x[:, :1, :], x, x[:, -1:, :]], axis=1)  # edge-pad along dim 1
    w0, w1, w2 = xp[:, :-2, :], xp[:, 1:-1, :], xp[:, 2:, :]
    maxp = jnp.maximum(jnp.maximum(w0, w1), w2)
    avgp = (w0 + w1 + w2) / 3.0
    cat = jnp.concatenate([maxp, avgp], axis=1)                    # [max ; avg] order
    out = jnp.einsum("oc,bcl->bol", W, cat,
                     precision=jax.lax.Precision.HIGHEST)
    return out + b[None, :, None]


if __name__ == "__main__":
    # dim = 8 -> Conv1d(16, 8, k=1). L = 256 exercises the native-layout path
    # (lane-dense L tiles, batch as a squeezed "parallel" grid axis, grid=(2, 1)).
    B, D, L = 2, 8, 256

    key = jax.random.PRNGKey(0)
    kx, kw, kb = jax.random.split(key, 3)

    x = jax.random.normal(kx, (B, D, L), dtype=jnp.float32)
    # Conv1d(dim*2, dim, kernel_size=1): weight (D, 2D, 1) -> squeeze -> (D, 2D),
    # input-channel halves ordered [max ; avg].
    fan_in = 2 * D
    bound = 1.0 / (fan_in ** 0.5)
    W = jax.random.uniform(kw, (D, 2 * D), jnp.float32, -bound, bound)
    b = jax.random.uniform(kb, (D,), jnp.float32, -bound, bound)

    out = concnnam_forward(x, W, b)
    out = jax.block_until_ready(out)

    ref = concnnam_reference(x, W, b)
    assert out.shape == (B, D, L)
    assert jnp.allclose(out, ref, atol=1e-4, rtol=1e-4), "mismatch vs reference"

    print("KERNEL_OK")
</pallas_src>

<mosaic_0001>
module attributes {stable_mosaic.version = 11 : i64} {
  func.func @_concnnam_kernel(%arg0: i32, %arg1: i32, %arg2: memref<1x8x256xf32, #tpu.memory_space<vmem>>, %arg3: memref<8x8xf32, #tpu.memory_space<vmem>>, %arg4: memref<8x8xf32, #tpu.memory_space<vmem>>, %arg5: memref<8x1xf32, #tpu.memory_space<vmem>>, %arg6: memref<1x8x256xf32, #tpu.memory_space<vmem>>) attributes {dimension_semantics = [#tpu.dimension_semantics<parallel>, #tpu.dimension_semantics<parallel>], iteration_bounds = array<i64: 2, 1>, scalar_prefetch = 0 : i64, scratch_operands = 0 : i64, tpu.core_type = #tpu.core_type<tc>, window_params = [{transform_indices = @transform_0, window_bounds = array<i64: 1, 8, 256>}, {pipeline_mode = #tpu.pipeline_mode<synchronous>, transform_indices = @transform_1, window_bounds = array<i64: 8, 8>}, {pipeline_mode = #tpu.pipeline_mode<synchronous>, transform_indices = @transform_2, window_bounds = array<i64: 8, 8>}, {pipeline_mode = #tpu.pipeline_mode<synchronous>, transform_indices = @transform_3, window_bounds = array<i64: 8, 1>}, {transform_indices = @transform_4, window_bounds = array<i64: 1, 8, 256>}]} {
    %c0 = arith.constant 0 : index
    %c0_0 = arith.constant 0 : index
    %c0_1 = arith.constant 0 : index
    %0 = vector.load %arg2[%c0, %c0_0, %c0_1] : memref<1x8x256xf32, #tpu.memory_space<vmem>>, vector<1x8x256xf32>
    %1 = vector.shape_cast %0 : vector<1x8x256xf32> to vector<8x256xf32>
    %2 = tpu.iota {dimensions = array<i32: 0>} : vector<8x256xi32>
    %c0_i32 = arith.constant 0 : i32
    %3 = vector.broadcast %c0_i32 : i32 to vector<8x256xi32>
    %4 = arith.cmpi eq, %2, %3 : vector<8x256xi32>
    %c1_i32 = arith.constant 1 : i32
    %5 = tpu.dynamic_rotate %1 by %c1_i32 dim 0 : vector<8x256xf32>, i32 -> vector<8x256xf32>
    %6 = arith.select %4, %1, %5 : vector<8x256xi1>, vector<8x256xf32>
    %c7_i32 = arith.constant 7 : i32
    %7 = vector.broadcast %c7_i32 : i32 to vector<8x256xi32>
    %8 = arith.cmpi eq, %2, %7 : vector<8x256xi32>
    %c7_i32_2 = arith.constant 7 : i32
    %9 = tpu.dynamic_rotate %1 by %c7_i32_2 dim 0 : vector<8x256xf32>, i32 -> vector<8x256xf32>
    %10 = arith.select %8, %1, %9 : vector<8x256xi1>, vector<8x256xf32>
    %11 = arith.maximumf %6, %1 : vector<8x256xf32>
    %12 = arith.maximumf %11, %10 : vector<8x256xf32>
    %13 = arith.addf %6, %1 : vector<8x256xf32>
    %14 = arith.addf %13, %10 : vector<8x256xf32>
    %cst = arith.constant 0.333333343 : f32
    %15 = vector.broadcast %cst : f32 to vector<8x256xf32>
    %16 = arith.mulf %14, %15 : vector<8x256xf32>
    %c0_3 = arith.constant 0 : index
    %c0_4 = arith.constant 0 : index
    %17 = vector.load %arg3[%c0_3, %c0_4] : memref<8x8xf32, #tpu.memory_space<vmem>>, vector<8x8xf32>
    %cst_5 = arith.constant dense<0.000000e+00> : vector<8x256xf32>
    %18 = tpu.matmul %17, %12, %cst_5 {dimension_numbers = #tpu.dot_dimension_numbers<[1], [0], [0], [1], [0, 0, 1, 1], [], []>} : vector<8x8xf32>, vector<8x256xf32>, vector<8x256xf32> -> vector<8x256xf32>
    %c0_6 = arith.constant 0 : index
    %c0_7 = arith.constant 0 : index
    %19 = vector.load %arg4[%c0_6, %c0_7] : memref<8x8xf32, #tpu.memory_space<vmem>>, vector<8x8xf32>
    %cst_8 = arith.constant dense<0.000000e+00> : vector<8x256xf32>
    %20 = tpu.matmul %19, %16, %cst_8 {dimension_numbers = #tpu.dot_dimension_numbers<[1], [0], [0], [1], [0, 0, 1, 1], [], []>} : vector<8x8xf32>, vector<8x256xf32>, vector<8x256xf32> -> vector<8x256xf32>
    %21 = arith.addf %18, %20 : vector<8x256xf32>
    %c0_9 = arith.constant 0 : index
    %c0_10 = arith.constant 0 : index
    %22 = vector.load %arg5[%c0_9, %c0_10] : memref<8x1xf32, #tpu.memory_space<vmem>>, vector<8x1xf32>
    %23 = vector.broadcast %22 : vector<8x1xf32> to vector<8x256xf32>
    %24 = arith.addf %21, %23 : vector<8x256xf32>
    %c0_11 = arith.constant 0 : index
    %c0_12 = arith.constant 0 : index
    %c0_13 = arith.constant 0 : index
    %25 = vector.load %arg6[%c0_11, %c0_12, %c0_13] : memref<1x8x256xf32, #tpu.memory_space<vmem>>, vector<1x8x256xf32>
    %26 = vector.shape_cast %25 : vector<1x8x256xf32> to vector<8x256xf32>
    %27 = vector.shape_cast %24 : vector<8x256xf32> to vector<1x8x256xf32>
    tpu.vector_store %arg6[%c0_11, %c0_12, %c0_13], %27 {strides = array<i32>} : memref<1x8x256xf32, #tpu.memory_space<vmem>>, vector<1x8x256xf32>,
    return
  }
  func.func @transform_0(%arg0: i32, %arg1: i32) -> (i32, i32, i32) {
    %c0_i32 = arith.constant 0 : i32
    %c0_i32_0 = arith.constant 0 : i32
    return %arg0, %c0_i32, %arg1 : i32, i32, i32
  }
  func.func @transform_1(%arg0: i32, %arg1: i32) -> (i32, i32) {
    %c0_i32 = arith.constant 0 : i32
    %c0_i32_0 = arith.constant 0 : i32
    %c0_i32_1 = arith.constant 0 : i32
    return %c0_i32, %c0_i32_0 : i32, i32
  }
  func.func @transform_2(%arg0: i32, %arg1: i32) -> (i32, i32) {
    %c0_i32 = arith.constant 0 : i32
    %c0_i32_0 = arith.constant 0 : i32
    %c0_i32_1 = arith.constant 0 : i32
    return %c0_i32, %c0_i32_0 : i32, i32
  }
  func.func @transform_3(%arg0: i32, %arg1: i32) -> (i32, i32) {
    %c0_i32 = arith.constant 0 : i32
    %c0_i32_0 = arith.constant 0 : i32
    %c0_i32_1 = arith.constant 0 : i32
    return %c0_i32, %c0_i32_0 : i32, i32
  }
  func.func @transform_4(%arg0: i32, %arg1: i32) -> (i32, i32, i32) {
    %c0_i32 = arith.constant 0 : i32
    %c0_i32_0 = arith.constant 0 : i32
    return %arg0, %c0_i32, %arg1 : i32, i32, i32
  }
}

</mosaic_0001>

<llo_original>
// kernel: tpu_custom_call.1
$region0: #{tpu_custom_call.1}
  #allocation0 [shape = 'u32[]', space=smem, size = 0x4, offset = 0x4, fixed_abs, tag = 'smem constant byte address 0x4 - core index']
  #allocation1 [shape = 'u32[144,128]{1,0:T(1,128)}', space=vmem, size = 0x12000, scoped, tag = 'internal scratch']
  %s0 = inlined_call_operand.hbm [shape: f32[2,8,256], index: 0, kind: input, shape index: {}]
  %s1 = inlined_call_operand.vmem [shape: f32[8,8], index: 1, kind: input, shape index: {}]
  %s2 = inlined_call_operand.vmem [shape: f32[8,8], index: 2, kind: input, shape index: {}]
  %s3 = inlined_call_operand.vmem [shape: f32[8,1], index: 3, kind: input, shape index: {}]
  %s4 = inlined_call_operand.hbm [shape: f32[2,8,256], index: 4, kind: output, shape index: {}]
  %s5 = sld [smem:[#allocation0]]
  $region53: #{tpu_custom_call.1} parent=0
    _
  %s7 = ssub.s32 1, %s5
  %s8 = scalar_select 0, %s7, %s5
  $region1: #{tpu_custom_call.1} parent=0
    #allocation2 [shape = 'u8[16384]{0}', space=vmem, size = 0x4000, scoped, tag = 'input window, operand 0']
    #allocation3 [shape = 's32[2]{0}', space=sflag, size = 0x8, scoped, tag = 'scoped memory for tpu_custom_call.1']
    #allocation4 [shape = 's32[2]{0}', space=sflag, size = 0x8, scoped, tag = 'scoped memory for tpu_custom_call.1']
    #allocation5 [shape = 'u8[16384]{0}', space=vmem, size = 0x4000, scoped, tag = 'output window, operand 0']
    %9 = vsyncpa [#allocation3], 0
    %s10 = scalar_lea.sflag [#allocation3], 1
    %11 = vsyncpa %s10, 0
    %12 = vsyncpa [#allocation4], 0
    %s13 = scalar_lea.sflag [#allocation4], 1
    %14 = vsyncpa %s13, 0
    loop: start=0, step=1, limit=4
    $region2: #{tpu_custom_call.1} parent=1 // loop_pre_header
      _
    $region3: #{tpu_custom_call.1} parent=1 // loop_header
      %s16 = sphi 0, %s20
      %p17 = scmp.ge.s32.totalorder %s16, 4
      %s23 = sphi 0, %s35
      %s24 = sphi 0, %s31
      %s25 = sphi 0, %s23
      %s26 = sphi 0, %s24
      %s27 = sphi 0, %s25
      %s28 = sphi 0, %s26
      %s40 = sphi 0, %s42
      %s43 = sphi 0, %s40
      %s44 = sphi 0, %s43
      %s60 = sphi 0, %s44
      %s64 = sphi 0, %s64
      %s66 = sphi 0, %s64
      %s67 = sphi 0, %s66
      %s81 = sphi 0, %s67
      %s85 = sphi 0, %s85
      %s87 = sphi 0, %s85
      %s88 = sphi 0, %s87
      %s102 = sphi 0, %s88
      %s106 = sphi 0, %s106
      %s108 = sphi 0, %s106
      %s109 = sphi 0, %s108
      %s123 = sphi 0, %s109
      %s131 = sphi 0, %s133
      %s134 = sphi 0, %s131
      %s135 = sphi 0, %s134
      %s151 = sphi 0, %s135
    $region4: #{tpu_custom_call.1} parent=1 // loop_header_branch
      %19 = sbr.rel (%p17) target = $region8
    $region5: #{tpu_custom_call.1} parent=1 // loop_body
      %s21 = ssub.s32 %s16, 1
      %s22 = ssub.s32 %s16, 2
      %s29 = sadd.s32 1, %s24
      %p30 = scmp.ge.s32.totalorder %s29, 1
      %s31 = scalar_select %p30, 0, %s29
      %s32 = sadd.s32 1, %s23
      %s33 = scalar_select %p30, %s32, %s23
      %p34 = scmp.ge.s32.totalorder %s33, 2
      %s35 = scalar_select %p34, 0, %s33
      %s36 = ssub.s32 %s23, %s35
      %s37 = ssub.s32 %s24, %s31
      %s38 = sor.u32 %s36, %s37
      %p39 = scmp.eq.s32.totalorder %s38, 0
      %s41 = sadd.s32 %s40, 1
      %s42 = scalar_select %p39, %s40, %s41
      %p45 = pneg %p39
      %p46 = scmp.eq.s32.totalorder %s16, 1
      %p47 = por %p45, %p46
      %p48 = scmp.ne.s32.totalorder %s40, %s43
      %p49 = scmp.eq.s32.totalorder %s16, 0
      %p50 = por %p48, %p49
      %p51 = scmp.ne.s32.totalorder %s40, %s43
      %p52 = scmp.eq.s32.totalorder %s21, 1
      %p53 = por %p51, %p52
      %p54 = scmp.ne.s32.totalorder %s43, %s44
      %p55 = scmp.eq.s32.totalorder %s21, 0
      %p56 = por %p54, %p55
      %p57 = scmp.ne.s32.totalorder %s43, %s44
      %p58 = scmp.eq.s32.totalorder %s22, 1
      %p59 = por %p57, %p58
      %p61 = scmp.ne.s32.totalorder %s44, %s60
      %p62 = scmp.eq.s32.totalorder %s22, 0
      %p63 = por %p61, %p62
      %s65 = sadd.s32 %s64, 1
      %p68 = scmp.eq.s32.totalorder %s16, 1
      %p69 = scmp.ne.s32.totalorder %s64, %s66
      %p70 = scmp.eq.s32.totalorder %s16, 0
      %p71 = por %p69, %p70
      %p72 = scmp.ne.s32.totalorder %s64, %s66
      %p73 = scmp.eq.s32.totalorder %s21, 1
      %p74 = por %p72, %p73
      %p75 = scmp.ne.s32.totalorder %s66, %s67
      %p76 = scmp.eq.s32.totalorder %s21, 0
      %p77 = por %p75, %p76
      %p78 = scmp.ne.s32.totalorder %s66, %s67
      %p79 = scmp.eq.s32.totalorder %s22, 1
      %p80 = por %p78, %p79
      %p82 = scmp.ne.s32.totalorder %s67, %s81
      %p83 = scmp.eq.s32.totalorder %s22, 0
      %p84 = por %p82, %p83
      %s86 = sadd.s32 %s85, 1
      %p89 = scmp.eq.s32.totalorder %s16, 1
      %p90 = scmp.ne.s32.totalorder %s85, %s87
      %p91 = scmp.eq.s32.totalorder %s16, 0
      %p92 = por %p90, %p91
      %p93 = scmp.ne.s32.totalorder %s85, %s87
      %p94 = scmp.eq.s32.totalorder %s21, 1
      %p95 = por %p93, %p94
      %p96 = scmp.ne.s32.totalorder %s87, %s88
      %p97 = scmp.eq.s32.totalorder %s21, 0
      %p98 = por %p96, %p97
      %p99 = scmp.ne.s32.totalorder %s87, %s88
      %p100 = scmp.eq.s32.totalorder %s22, 1
      %p101 = por %p99, %p100
      %p103 = scmp.ne.s32.totalorder %s88, %s102
      %p104 = scmp.eq.s32.totalorder %s22, 0
      %p105 = por %p103, %p104
      %s107 = sadd.s32 %s106, 1
      %p110 = scmp.eq.s32.totalorder %s16, 1
      %p111 = scmp.ne.s32.totalorder %s106, %s108
      %p112 = scmp.eq.s32.totalorder %s16, 0
      %p113 = por %p111, %p112
      %p114 = scmp.ne.s32.totalorder %s106, %s108
      %p115 = scmp.eq.s32.totalorder %s21, 1
      %p116 = por %p114, %p115
      %p117 = scmp.ne.s32.totalorder %s108, %s109
      %p118 = scmp.eq.s32.totalorder %s21, 0
      %p119 = por %p117, %p118
      %p120 = scmp.ne.s32.totalorder %s108, %s109
      %p121 = scmp.eq.s32.totalorder %s22, 1
      %p122 = por %p120, %p121
      %p124 = scmp.ne.s32.totalorder %s109, %s123
      %p125 = scmp.eq.s32.totalorder %s22, 0
      %p126 = por %p124, %p125
      %s127 = ssub.s32 %s23, %s35
      %s128 = ssub.s32 %s24, %s31
      %s129 = sor.u32 %s127, %s128
      %p130 = scmp.eq.s32.totalorder %s129, 0
      %s132 = sadd.s32 %s131, 1
      %s133 = scalar_select %p130, %s131, %s132
      %p136 = pneg %p130
      %p137 = scmp.eq.s32.totalorder %s16, 1
      %p138 = por %p136, %p137
      %p139 = scmp.ne.s32.totalorder %s131, %s134
      %p140 = scmp.eq.s32.totalorder %s16, 0
      %p141 = por %p139, %p140
      %p142 = scmp.ne.s32.totalorder %s131, %s134
      %p143 = scmp.eq.s32.totalorder %s21, 1
      %p144 = por %p142, %p143
      %p145 = scmp.ne.s32.totalorder %s134, %s135
      %p146 = scmp.eq.s32.totalorder %s21, 0
      %p147 = por %p145, %p146
      %p148 = scmp.ne.s32.totalorder %s134, %s135
      %p149 = scmp.eq.s32.totalorder %s22, 1
      %p150 = por %p148, %p149
      %p152 = scmp.ne.s32.totalorder %s135, %s151
      %p153 = scmp.eq.s32.totalorder %s22, 0
      %p154 = por %p152, %p153
      %p155 = scmp.le.s32.totalorder 1, %s16
      %p156 = scmp.lt.s32.totalorder %s16, 3
      %p157 = pnand %p155, %p156
      %p158 = pneg %p157
      // Predicated region
      $region9: #{tpu_custom_call.1} parent=5 // pred_check
        _
      $region10: #{tpu_custom_call.1} parent=5 // pred_check_branch
        %160 = sbr.rel (%p157) target = $region12
      $region11: #{tpu_custom_call.1} parent=5 // pred_region
        %s161 = ssub.s32 %s16, 1
        // Predicated region
        $region13: #{tpu_custom_call.1} parent=11 // pred_check
          %p162 = pneg %p77
        $region14: #{tpu_custom_call.1} parent=11 // pred_check_branch
          %164 = sbr.rel (%p162) target = $region16
        $region15: #{tpu_custom_call.1} parent=11 // pred_region
          _
        $region16: #{tpu_custom_call.1} parent=11 // pred_fallthru
          _
        // Predicated region
        $region17: #{tpu_custom_call.1} parent=11 // pred_check
          %p165 = pneg %p98
        $region18: #{tpu_custom_call.1} parent=11 // pred_check_branch
          %167 = sbr.rel (%p165) target = $region20
        $region19: #{tpu_custom_call.1} parent=11 // pred_region
          _
        $region20: #{tpu_custom_call.1} parent=11 // pred_fallthru
          _
        // Predicated region
        $region21: #{tpu_custom_call.1} parent=11 // pred_check
          %p168 = pneg %p119
        $region22: #{tpu_custom_call.1} parent=11 // pred_check_branch
          %170 = sbr.rel (%p168) target = $region24
        $region23: #{tpu_custom_call.1} parent=11 // pred_region
          _
        $region24: #{tpu_custom_call.1} parent=11 // pred_fallthru
          _
      $region12: #{tpu_custom_call.1} parent=5 // pred_fallthru
        _
      %p171 = scmp.lt.s32.totalorder %s16, 2
      // Predicated region
      $region25: #{tpu_custom_call.1} parent=5 // pred_check
        %p172 = pneg %p171
      $region26: #{tpu_custom_call.1} parent=5 // pred_check_branch
        %174 = sbr.rel (%p172) target = $region28
      $region27: #{tpu_custom_call.1} parent=5 // pred_region
        // Predicated region
        $region29: #{tpu_custom_call.1} parent=27 // pred_check
          %p175 = pneg %p50
        $region30: #{tpu_custom_call.1} parent=27 // pred_check_branch
          %177 = sbr.rel (%p175) target = $region32
        $region31: #{tpu_custom_call.1} parent=27 // pred_region
          %s178 = sand.u32 %s40, 1
          %s179 = scalar_lea.sflag [#allocation3], %s178
          %s180 = sand.u32 %s40, 1
          %s181 = smul.addr %s180, 16
          %s182 = scalar_lea.vmem [#allocation2], %s181
          %s183 = smul.u32 2, %s24
          %s185 = ssub.s32 256, 256
          %186 = vsyncadd %s179, %s185
          %s187 = smul.addr %s23, 2
          %s188 = sadd.s32 %s183, %s187
          %s189 = smul.addr %s188, 128
          %s190 = scalar_lea.hbm %s0, %s189
          %s192 = sshll.u32 %s182, 4
          %s193 = int_to_ptr.vmem [resolvable:$true] %s192
          %195 = dma.hbm_to_vmem [thread:$0]  %s190, 256, %s193, %s179
        $region32: #{tpu_custom_call.1} parent=27 // pred_fallthru
          _
      $region28: #{tpu_custom_call.1} parent=5 // pred_fallthru
        _
      %p196 = scmp.le.s32.totalorder 1, %s16
      %p197 = scmp.lt.s32.totalorder %s16, 3
      %p198 = pnand %p196, %p197
      %p199 = pneg %p198
      // Predicated region
      $region33: #{tpu_custom_call.1} parent=5 // pred_check
        _
      $region34: #{tpu_custom_call.1} parent=5 // pred_check_branch
        %201 = sbr.rel (%p198) target = $region36
      $region35: #{tpu_custom_call.1} parent=5 // pred_region
        %s202 = ssub.s32 %s16, 1
        %s203 = sand.u32 %s43, 1
        %s204 = scalar_lea.sflag [#allocation3], %s203
        %s205 = sand.u32 %s43, 1
        %s206 = smul.addr %s205, 16
        %s207 = scalar_lea.vmem [#allocation2], %s206
        // Predicated region
        $region37: #{tpu_custom_call.1} parent=35 // pred_check
          %p208 = pneg %p56
        $region38: #{tpu_custom_call.1} parent=35 // pred_check_branch
          %210 = sbr.rel (%p208) target = $region40
        $region39: #{tpu_custom_call.1} parent=35 // pred_region
          %211 = dma.done %s204, 256
        $region40: #{tpu_custom_call.1} parent=35 // pred_fallthru
          _
        %s212 = sand.u32 %s43, 1
        %s213 = scalar_lea.sflag [#allocation3], %s212
        %s214 = sand.u32 %s43, 1
        %s215 = smul.addr %s214, 16
        %s216 = scalar_lea.vmem [#allocation2], %s215
        %p217 = pneg %p56
        %p218 = pneg %p53
        %p219 = pneg %p77
        %p220 = pneg %p74
        %p221 = pneg %p98
        %p222 = pneg %p95
        %p223 = pneg %p119
        %p224 = pneg %p116
        %p225 = pneg %p147
        %p226 = pneg %p144
        %s227 = sand.u32 %s134, 1
        %s228 = scalar_lea.sflag [#allocation4], %s227
        %s229 = sand.u32 %s134, 1
        %s230 = smul.addr %s229, 16
        %s231 = scalar_lea.vmem [#allocation5], %s230
        %s232 = smul.u32 2, %s26
        %s233 = smul.u32 2, %s26
        %v234 = vld [vmem:[%s207] sm:$0xff]
        %v235 = vld [vmem:[%s207 + $0x8] sm:$0xff]
        %v236 = vlaneseq
        %v237 = vshrl.u32 %v236, 7
        %vm238 = vcmp.eq.s32.totalorder %v237, 0
        %v239 = vrot.slane %v234, 7
        %v240 = vrot.slane %v235, 7
        %v241 = vsel %vm238, %v234, %v239
        %v242 = vsel %vm238, %v235, %v240
        %vm243 = vcmp.eq.s32.totalorder %v237, 7
        %v244 = vrot.slane %v234, 1
        %v245 = vrot.slane %v235, 1
        %v246 = vsel %vm243, %v234, %v244
        %v247 = vsel %vm243, %v235, %v245
        %v248 = vmax.f32 %v241, %v234
        %v249 = vmax.f32 %v242, %v235
        %v250 = vmax.f32 %v248, %v246
        %v251 = vmax.f32 %v249, %v247
        %v252 = vadd.f32 %v241, %v234
        %v253 = vadd.f32 %v242, %v235
        %v254 = vadd.f32 %v252, %v246
        %v255 = vadd.f32 %v253, %v247
        %v256 = vmul.f32 %v254, 0.33333334
        %v257 = vmul.f32 %v255, 0.33333334
        %v258 = vld [vmem:[%s1] sm:$0xff]
        %v259 = vld [vmem:[%s2] sm:$0xff]
        %vm260 = vcmask 64512
        %v262 = vsel %vm260, %v259, 0
        %264 = vmatprep.subr.mxu0 %v257
        %265 = vmatpush1.msra.mxu0 %v256
        %266 = vmatprep.subr.mxu0 0.0
        %267 = vmatpush1.msra.mxu0 0.0
        %268 = vmatprep.subr.mxu0 0.0
        %269 = vmatpush1.msra.mxu0 0.0
        %270 = vmatprep.subr.mxu0 0.0
        %271 = vmatpush1.msra.mxu0 0.0
        %272 = vmatprep.subr.mxu0 0.0
        %273 = vmatpush1.msra.mxu0 0.0
        %274 = vmatprep.subr.mxu0 0.0
        %275 = vmatpush1.msra.mxu0 0.0
        %276 = vmatprep.subr.mxu0 0.0
        %277 = vmatpush1.msra.mxu0 0.0
        %278 = vmatprep.subr.mxu0 0.0
        %279 = vmatpush1.msra.mxu0 0.0
        %280 = vmatprep.subr.mxu0 0.0
        %281 = vmatpush1.msra.mxu0 0.0
        %282 = vmatprep.subr.mxu0 0.0
        %283 = vmatpush1.msra.mxu0 0.0
        %284 = vmatprep.subr.mxu0 0.0
        %285 = vmatpush1.msra.mxu0 0.0
        %286 = vmatprep.subr.mxu0 0.0
        %287 = vmatpush1.msra.mxu0 0.0
        %288 = vmatprep.subr.mxu0 0.0
        %289 = vmatpush1.msra.mxu0 0.0
        %290 = vmatprep.subr.mxu0 0.0
        %291 = vmatpush1.msra.mxu0 0.0
        %292 = vmatprep.subr.mxu0 0.0
        %293 = vmatpush1.msra.mxu0 0.0
        %294 = vmatprep.subr.mxu0 0.0
        %295 = vmatpush1.msra.mxu0 0.0
        %296 = vmatprep.subr.mxu0 0.0
        %297 = vmatpush1.msra.mxu0 0.0
        %298 = vmatprep.subr.mxu0 0.0
        %299 = vmatpush1.msra.mxu0 0.0
        %300 = vmatprep.subr.mxu0 0.0
        %301 = vmatpush1.msra.mxu0 0.0
        %302 = vmatprep.subr.mxu0 0.0
        %303 = vmatpush1.msra.mxu0 0.0
        %304 = vmatprep.subr.mxu0 0.0
        %305 = vmatpush1.msra.mxu0 0.0
        %306 = vmatprep.subr.mxu0 0.0
        %307 = vmatpush1.msra.mxu0 0.0
        %308 = vmatprep.subr.mxu0 0.0
        %309 = vmatpush1.msra.mxu0 0.0
        %310 = vmatprep.subr.mxu0 0.0
        %311 = vmatpush1.msra.mxu0 0.0
        %312 = vmatprep.subr.mxu0 0.0
        %313 = vmatpush1.msra.mxu0 0.0
        %314 = vmatprep.subr.mxu0 0.0
        %315 = vmatpush1.msra.mxu0 0.0
        %316 = vmatprep.subr.mxu0 0.0
        %317 = vmatpush1.msra.mxu0 0.0
        %318 = vmatprep.subr.mxu0 0.0
        %319 = vmatpush1.msra.mxu0 0.0
        %320 = vmatprep.subr.mxu0 0.0
        %321 = vmatpush1.msra.mxu0 0.0
        %322 = vmatprep.subr.mxu0 0.0
        %323 = vmatpush1.msra.mxu0 0.0
        %324 = vmatprep.subr.mxu0 0.0
        %325 = vmatpush1.msra.mxu0 0.0
        %326 = vmatprep.subr.mxu0 0.0
        %327 = vmatpush1.msra.mxu0 0.0
        %328 = vmatprep.mubr.f32.mxu0 0.0
        %329 = vmatmul.mubr.f32.gmra.mrb[0].mxu0 %v262
        %v330 = vpop.f32.mrb[0].mxu0
        %v331 = vadd.f32 0.0, %v330
        %v332 = vpop.f32.mrb[0].mxu0
        %v333 = vadd.f32 0.0, %v332
        %334 = vdwg.mxu0
        %v336 = vsel %vm260, %v258, 0
        %338 = vmatprep.subr.mxu0 %v251
        %339 = vmatpush1.msra.mxu0 %v250
        %340 = vmatprep.subr.mxu0 0.0
        %341 = vmatpush1.msra.mxu0 0.0
        %342 = vmatprep.subr.mxu0 0.0
        %343 = vmatpush1.msra.mxu0 0.0
        %344 = vmatprep.subr.mxu0 0.0
        %345 = vmatpush1.msra.mxu0 0.0
        %346 = vmatprep.subr.mxu0 0.0
        %347 = vmatpush1.msra.mxu0 0.0
        %348 = vmatprep.subr.mxu0 0.0
        %349 = vmatpush1.msra.mxu0 0.0
        %350 = vmatprep.subr.mxu0 0.0
        %351 = vmatpush1.msra.mxu0 0.0
        %352 = vmatprep.subr.mxu0 0.0
        %353 = vmatpush1.msra.mxu0 0.0
        %354 = vmatprep.subr.mxu0 0.0
        %355 = vmatpush1.msra.mxu0 0.0
        %356 = vmatprep.subr.mxu0 0.0
        %357 = vmatpush1.msra.mxu0 0.0
        %358 = vmatprep.subr.mxu0 0.0
        %359 = vmatpush1.msra.mxu0 0.0
        %360 = vmatprep.subr.mxu0 0.0
        %361 = vmatpush1.msra.mxu0 0.0
        %362 = vmatprep.subr.mxu0 0.0
        %363 = vmatpush1.msra.mxu0 0.0
        %364 = vmatprep.subr.mxu0 0.0
        %365 = vmatpush1.msra.mxu0 0.0
        %366 = vmatprep.subr.mxu0 0.0
        %367 = vmatpush1.msra.mxu0 0.0
        %368 = vmatprep.subr.mxu0 0.0
        %369 = vmatpush1.msra.mxu0 0.0
        %370 = vmatprep.subr.mxu0 0.0
        %371 = vmatpush1.msra.mxu0 0.0
        %372 = vmatprep.subr.mxu0 0.0
        %373 = vmatpush1.msra.mxu0 0.0
        %374 = vmatprep.subr.mxu0 0.0
        %375 = vmatpush1.msra.mxu0 0.0
        %376 = vmatprep.subr.mxu0 0.0
        %377 = vmatpush1.msra.mxu0 0.0
        %378 = vmatprep.subr.mxu0 0.0
        %379 = vmatpush1.msra.mxu0 0.0
        %380 = vmatprep.subr.mxu0 0.0
        %381 = vmatpush1.msra.mxu0 0.0
        %382 = vmatprep.subr.mxu0 0.0
        %383 = vmatpush1.msra.mxu0 0.0
        %384 = vmatprep.subr.mxu0 0.0
        %385 = vmatpush1.msra.mxu0 0.0
        %386 = vmatprep.subr.mxu0 0.0
        %387 = vmatpush1.msra.mxu0 0.0
        %388 = vmatprep.subr.mxu0 0.0
        %389 = vmatpush1.msra.mxu0 0.0
        %390 = vmatprep.subr.mxu0 0.0
        %391 = vmatpush1.msra.mxu0 0.0
        %392 = vmatprep.subr.mxu0 0.0
        %393 = vmatpush1.msra.mxu0 0.0
        %394 = vmatprep.subr.mxu0 0.0
        %395 = vmatpush1.msra.mxu0 0.0
        %396 = vmatprep.subr.mxu0 0.0
        %397 = vmatpush1.msra.mxu0 0.0
        %398 = vmatprep.subr.mxu0 0.0
        %399 = vmatpush1.msra.mxu0 0.0
        %400 = vmatprep.subr.mxu0 0.0
        %401 = vmatpush1.msra.mxu0 0.0
        %402 = vmatprep.mubr.f32.mxu0 0.0
        %403 = vmatmul.mubr.f32.gmra.mrb[0].mxu0 %v336
        %v404 = vpop.f32.mrb[0].mxu0
        %v405 = vadd.f32 %v331, %v404
        %v406 = vpop.f32.mrb[0].mxu0
        %v407 = vadd.f32 %v333, %v406
        %408 = vdwg.mxu0
        %v409 = vld [vmem:[%s3] sm:$0xff]
        %411 = vset.pattern.permute.xlu0 0
        %412 = vperm.xlu0 %411, %v409
        %v413 = vpop.permute.xlu0 %412
        %v415 = vadd.f32 %v405, %v413
        %v416 = vadd.f32 %v407, %v413
        %417 = vst [vmem:[%s231] sm:$0xff] %v415
        %418 = vst [vmem:[%s231 + $0x8] sm:$0xff] %v416
        %s419 = sand.u32 %s134, 1
        %s420 = scalar_lea.sflag [#allocation4], %s419
        %s421 = sand.u32 %s134, 1
        %s422 = smul.addr %s421, 16
        %s423 = scalar_lea.vmem [#allocation5], %s422
        // Predicated region
        $region41: #{tpu_custom_call.1} parent=35 // pred_check
          %p424 = pneg %p144
        $region42: #{tpu_custom_call.1} parent=35 // pred_check_branch
          %426 = sbr.rel (%p424) target = $region44
        $region43: #{tpu_custom_call.1} parent=35 // pred_region
          %s427 = smul.u32 2, %s26
          %s429 = ssub.s32 256, 256
          %430 = vsyncadd %s420, %s429
          %s431 = smul.addr %s25, 2
          %s432 = sadd.s32 %s427, %s431
          %s433 = smul.addr %s432, 128
          %s434 = scalar_lea.hbm %s4, %s433
          %s436 = sshll.u32 %s423, 4
          %s437 = int_to_ptr.vmem [resolvable:$true] %s436
          %439 = dma.vmem_to_hbm [thread:$0]  %s437, 256, %s434, %s420
        $region44: #{tpu_custom_call.1} parent=35 // pred_fallthru
          _
      $region36: #{tpu_custom_call.1} parent=5 // pred_fallthru
        _
      %p440 = scmp.le.s32.totalorder 2, %s16
      // Predicated region
      $region45: #{tpu_custom_call.1} parent=5 // pred_check
        %p441 = pneg %p440
      $region46: #{tpu_custom_call.1} parent=5 // pred_check_branch
        %443 = sbr.rel (%p441) target = $region48
      $region47: #{tpu_custom_call.1} parent=5 // pred_region
        %s444 = ssub.s32 %s16, 2
        // Predicated region
        $region49: #{tpu_custom_call.1} parent=47 // pred_check
          %p445 = pneg %p150
        $region50: #{tpu_custom_call.1} parent=47 // pred_check_branch
          %447 = sbr.rel (%p445) target = $region52
        $region51: #{tpu_custom_call.1} parent=47 // pred_region
          %s448 = sand.u32 %s135, 1
          %s449 = scalar_lea.sflag [#allocation4], %s448
          %s450 = sand.u32 %s135, 1
          %s451 = smul.addr %s450, 16
          %s452 = scalar_lea.vmem [#allocation5], %s451
          %453 = dma.done %s449, 256
        $region52: #{tpu_custom_call.1} parent=47 // pred_fallthru
          _
      $region48: #{tpu_custom_call.1} parent=5 // pred_fallthru
        _
    $region6: #{tpu_custom_call.1} parent=1 // loop_footer
      %s20 = sadd.s32 1, %s16
    $region7: #{tpu_custom_call.1} parent=1 // loop_footer_branch
      %15 = sbr.rel target = $region3
    $region8: #{tpu_custom_call.1} parent=1 // loop_exit
      _
    %454 = vsyncpa [#allocation3], 1
    %s455 = scalar_lea.sflag [#allocation3], 1
    %456 = vsyncpa %s455, 1
    %457 = vsyncpa [#allocation4], 1
    %s458 = scalar_lea.sflag [#allocation4], 1
    %459 = vsyncpa %s458, 1

</llo_original>
